<compile_context>
chip_gen: v7x
topology: tpu7x:2x2x1
jax: 0.10.0
libtpu: 0.0.40
codegen_flags: <defaults>
</compile_context>

<pallas_src>
import jax
import jax.numpy as jnp
from jax import lax
from jax.experimental import pallas as pl
from jax.experimental.pallas import tpu as pltpu


def _round_up(x, m):
    return (x + m - 1) // m * m


def _tpu_hw_info():
    """Best-effort (num_tensorcores, vmem_capacity_bytes) with safe fallbacks."""
    cores, vmem = 1, 128 * 1024 * 1024
    try:
        info = pltpu.get_tpu_info()
        v = getattr(info, "vmem_capacity_bytes", None)
        if isinstance(v, int) and v > 0:
            vmem = v
        for name in ("num_cores", "num_tensorcores", "tensorcore_count", "core_count"):
            c = getattr(info, name, None)
            if isinstance(c, int) and c > 0:
                cores = c
                break
    except Exception:
        pass
    return cores, vmem


def _contrastive_kernel(params_ref,                   # SMEM (2,): [1/temp, eps]
                        anchor_ref, negt_ref,         # VMEM (tn,D), (D,tm)  matmul dtype
                        pos_ref,                      # VMEM (tn,1) f32, already / temp
                        pl1_ref, plall_ref,           # VMEM (tn,1) / (1,tm) int32
                        t1_ref, fall_ref,             # VMEM (tn,1) / (1,tm) f32
                        loss_ref,                     # out (1,tn) f32, lane-dense
                        m_sc, l_sc):                  # VMEM scratch (tn,1) f32
    j = pl.program_id(1)
    inv_t = params_ref[0]
    eps = params_ref[1]

    # ---- init at the first negatives block of every row block ---------------
    @pl.when(j == 0)
    def _():
        pos = pos_ref[...]
        m_sc[...] = pos                        # running max starts at the pos column
        l_sc[...] = jnp.ones_like(pos)         # exp(pos - pos): prepended ones column

    # ---- scores for this negatives block (MXU, f32 accumulate) --------------
    # neg_pair is pre-transposed to [D, M] in the wrapper -> plain A @ B, no
    # per-tile XLU transpose.
    s = lax.dot_general(anchor_ref[...], negt_ref[...],
                        dimension_numbers=(((1,), (0,)), ((), ())),
                        preferred_element_type=jnp.float32) * inv_t   # [tn, tm]

    # Single boolean mask.  fcs condition refactored to fall <= (thr - f1), so
    # there is no [tn,tm] broadcast add.  Padded negative columns have
    # fall = +inf (wrapper) so they fail `keep` with no iota/column mask; their
    # s = 0 only enters the running max, which is neutral for the softmax ratio.
    keep = (pl1_ref[...] != plall_ref[...]) & (fall_ref[...] <= t1_ref[...])

    # ---- online softmax update ----------------------------------------------
    m_old = m_sc[...]
    m_new = jnp.maximum(m_old, jnp.max(s, axis=-1, keepdims=True))
    alpha = jnp.exp(m_old - m_new)                                     # EUP
    p = jnp.where(keep, jnp.exp(s - m_new), 0.0)                       # EUP exp + select
    l_sc[...] = alpha * l_sc[...] + jnp.sum(p, axis=-1, keepdims=True)
    m_sc[...] = m_new

    # ---- finalize on the last negatives block --------------------------------
    @pl.when(j == pl.num_programs(1) - 1)
    def _():
        exp_pos = jnp.exp(pos_ref[...] - m_sc[...])                    # [tn, 1]
        inv_den = pl.reciprocal(l_sc[...] + eps, approx=False)         # EUP recip
        loss = -jnp.log(exp_pos * inv_den + eps)                       # [tn, 1]
        loss_ref[...] = jnp.transpose(loss)                            # lane-dense (1, tn)


def contrastive_loss(anchor, pos_pair, neg_pair,
                     pseudo_label_1, pseudo_label_2, pseudo_label_all,
                     fcs_1, fcs_2, fcs_all,
                     *, bdp_threshold, fdp_threshold, temp=0.1, eps=1e-8,
                     block_n=None, block_m=None, matmul_dtype=jnp.bfloat16):
    """Pallas-TPU forward of ContrastiveLoss.

    matmul_dtype: dtype fed to the MXU (default bf16 = full-rate MXU and halved
    neg_pair HBM traffic).  Pass jnp.float32 or None for the exact-f32 path.
    """
    del pseudo_label_2, fcs_2                      # unused in the reference forward
    N, D = anchor.shape
    M = neg_pair.shape[0]

    num_cores, vmem_cap = _tpu_hw_info()

    mm_dtype = jnp.dtype(anchor.dtype) if matmul_dtype is None else jnp.dtype(matmul_dtype)
    itemsize = mm_dtype.itemsize

    # ---- operand prep (outside the kernel) -----------------------------------
    anchor_mm = anchor.astype(mm_dtype)
    pos_mm = pos_pair.astype(mm_dtype)
    negT = neg_pair.astype(mm_dtype).T                                  # [D, M]

    inv_t = 1.0 / float(temp)
    thr = float(bdp_threshold) + float(fdp_threshold)

    # pos column computed here (trivial XLA op) so the kernel never holds a
    # (tn, D) pos_pair tile in VMEM.
    pos_col = jnp.sum(anchor_mm.astype(jnp.float32) * pos_mm.astype(jnp.float32),
                      axis=-1, keepdims=True) * inv_t                   # [N,1] f32

    pl1 = pseudo_label_1.reshape(N, 1).astype(jnp.int32)
    pl_all = pseudo_label_all.reshape(1, M).astype(jnp.int32)
    t1 = thr - fcs_1.reshape(N, 1).astype(jnp.float32)                  # thr - f1
    f_all = fcs_all.reshape(1, M).astype(jnp.float32)

    # ---- generation-aware tile choice ----------------------------------------
    big_vmem = vmem_cap >= (100 << 20)             # v5e/v6e: 128 MiB, v7x: 64 MiB
    bn = block_n if block_n is not None else (512 if big_vmem else 256)
    bm = block_m if block_m is not None else (1024 if big_vmem else 512)

    # Multi-TC chips (v7x): keep >= num_cores blocks on the "parallel" N axis.
    if num_cores > 1 and N > 128:
        bn = min(bn, _round_up(pl.cdiv(N, num_cores), 128))

    def vmem_bytes(tn_, tm_, nbuf):
        return (2 * tn_ * D * itemsize             # anchor tile (double-buffered)
                + nbuf * D * tm_ * itemsize        # neg tile (nbuf-buffered)
                + 2 * 4 * (3 * tn_ + 2 * tm_)      # pos/pl1/t1 cols + pl_all/f_all rows
                + 4 * tn_                          # loss out block
                + 2 * 4 * tn_                      # m / l scratch
                + 4 * 4 * tn_ * tm_)               # ~4 [tn,tm] f32 compiler temporaries

    neg_bufs = 3 if D <= 128 else 2                # small D: 3rd buffer can hide DMA
    budget = int(0.8 * vmem_cap)
    while vmem_bytes(min(bn, N), min(bm, M), neg_bufs) > budget and bm > 256:
        bm //= 2
    if vmem_bytes(min(bn, N), min(bm, M), neg_bufs) > budget:
        neg_bufs = 2
    while vmem_bytes(min(bn, N), min(bm, M), neg_bufs) > budget and bn > 128:
        bn //= 2

    if N <= bn:
        tn, n_pad = N, N
    else:
        tn, n_pad = bn, _round_up(N, bn)
    if M <= bm:
        tm, m_pad = M, M
    else:
        tm, m_pad = bm, _round_up(M, bm)
    grid = (n_pad // tn, m_pad // tm)

    # ---- padding (outside the kernel) -----------------------------------------
    def _pad(x, rows, cols, value=0):
        pr, pc = rows - x.shape[0], cols - x.shape[1]
        if pr or pc:
            return jnp.pad(x, ((0, pr), (0, pc)), constant_values=value)
        return x

    anchor_p = _pad(anchor_mm, n_pad, D)
    negT_p = _pad(negT, D, m_pad)
    pos_p = _pad(pos_col, n_pad, 1)
    pl1_p = _pad(pl1, n_pad, 1)
    pl_all_p = _pad(pl_all, 1, m_pad)
    t1_p = _pad(t1, n_pad, 1)
    f_all_p = _pad(f_all, 1, m_pad, value=jnp.inf)   # padded cols always fail `keep`

    # scalars in SMEM -> changing temp/eps does not recompile
    params = jnp.array([inv_t, float(eps)], jnp.float32)

    # neg BlockSpec; 3-deep pipelining only when the pipeline is long enough and
    # the VMEM budget allows it.
    neg_map = lambda i, j: (0, j)
    neg_spec = pl.BlockSpec((D, tm), neg_map)
    if neg_bufs > 2 and grid[1] >= 4:
        try:
            neg_spec = pl.BlockSpec((D, tm), neg_map, pipeline_mode=pl.Buffered(neg_bufs))
        except TypeError:           # older BlockSpec without pipeline_mode
            neg_spec = pl.BlockSpec((D, tm), neg_map)

    grid_n = grid[0]
    cost = pl.CostEstimate(
        flops=2 * N * M * D + 8 * N * M,
        transcendentals=N * M + 4 * N,
        # neg_pair (and the (1,M) label/fcs rows) are re-streamed once per row block.
        bytes_accessed=int(grid_n * (M * D * itemsize + 2 * M * 4)
                           + N * D * itemsize + 4 * N * 4 + N * 4))

    vmem_limit = int(min(0.875 * vmem_cap,
                         max(vmem_bytes(tn, tm, neg_bufs) + (8 << 20), 48 << 20)))

    out = pl.pallas_call(
        _contrastive_kernel,
        out_shape=jax.ShapeDtypeStruct((1, n_pad), jnp.float32),
        grid=grid,
        in_specs=[
            pl.BlockSpec(memory_space=pltpu.MemorySpace.SMEM),    # params
            pl.BlockSpec((tn, D), lambda i, j: (i, 0)),           # anchor
            neg_spec,                                             # neg^T  (D, tm)
            pl.BlockSpec((tn, 1), lambda i, j: (i, 0)),           # pos / temp
            pl.BlockSpec((tn, 1), lambda i, j: (i, 0)),           # pseudo_label_1
            pl.BlockSpec((1, tm), lambda i, j: (0, j)),           # pseudo_label_all
            pl.BlockSpec((tn, 1), lambda i, j: (i, 0)),           # thr - fcs_1
            pl.BlockSpec((1, tm), lambda i, j: (0, j)),           # fcs_all (+inf pad)
        ],
        out_specs=pl.BlockSpec((1, tn), lambda i, j: (0, i)),
        scratch_shapes=[pltpu.VMEM((tn, 1), jnp.float32),         # running max
                        pltpu.VMEM((tn, 1), jnp.float32)],        # running masked exp-sum
        compiler_params=pltpu.CompilerParams(
            dimension_semantics=("parallel", "arbitrary"),
            vmem_limit_bytes=vmem_limit),
        cost_estimate=cost,
    )(params, anchor_p, negT_p, pos_p, pl1_p, pl_all_p, t1_p, f_all_p)

    return out[0, :N]


# --------------------------- verification helpers ---------------------------

def _reference(anchor, pos_pair, neg_pair, pl1, pl_all, f1, f_all,
               *, bdp_threshold, fdp_threshold, temp, eps, matmul_dtype=None):
    """Pure-JAX transcription of the PyTorch forward (optionally on rounded inputs)."""
    if matmul_dtype is not None and jnp.dtype(matmul_dtype) != jnp.float32:
        cast = lambda x: x.astype(matmul_dtype).astype(jnp.float32)
        anchor, pos_pair, neg_pair = cast(anchor), cast(pos_pair), cast(neg_pair)
    N = anchor.shape[0]
    pos = jnp.sum(anchor * pos_pair / temp, axis=-1, keepdims=True)
    mask_pixel = (pl1 != pl_all.reshape(-1)[None, :]).astype(jnp.float32)
    mask_pixel = jnp.concatenate([jnp.ones((N, 1), jnp.float32), mask_pixel], 1)
    mask_patch = (f1 + f_all.reshape(-1)[None, :]
                  <= bdp_threshold + fdp_threshold).astype(jnp.float32)
    mask_patch = jnp.concatenate([jnp.ones((N, 1), jnp.float32), mask_patch], 1)
    neg = anchor @ neg_pair.T / temp
    neg = jnp.concatenate([pos, neg], 1)
    m = jnp.max(neg, axis=1, keepdims=True)
    exp_neg = jnp.sum(jnp.exp(neg - m) * mask_pixel * mask_patch, axis=-1)
    loss = jnp.exp(pos - m)[:, 0] / (exp_neg + eps)
    return -jnp.log(loss + eps)


def _run_case(key, N, M, D, *, bdp, fdp, temp, eps,
              block_n=None, block_m=None, matmul_dtype=None, rtol=1e-4, atol=1e-4):
    k = jax.random.split(key, 8)
    anchor = jax.random.normal(k[0], (N, D), jnp.float32)
    pos_pair = jax.random.normal(k[1], (N, D), jnp.float32)
    neg_pair = jax.random.normal(k[2], (M, D), jnp.float32)
    pseudo_label_1 = jax.random.randint(k[3], (N, 1), 0, 4, jnp.int32)
    pseudo_label_2 = jax.random.randint(k[4], (N, 1), 0, 4, jnp.int32)   # unused
    pseudo_label_all = jax.random.randint(k[5], (M, 1), 0, 4, jnp.int32)
    fcs_1 = jax.random.uniform(k[6], (N, 1), jnp.float32)
    fcs_2 = jax.random.uniform(k[6], (N, 1), jnp.float32)                # unused
    fcs_all = jax.random.uniform(k[7], (M, 1), jnp.float32)

    loss = contrastive_loss(
        anchor, pos_pair, neg_pair,
        pseudo_label_1, pseudo_label_2, pseudo_label_all,
        fcs_1, fcs_2, fcs_all,
        bdp_threshold=bdp, fdp_threshold=fdp, temp=temp, eps=eps,
        block_n=block_n, block_m=block_m, matmul_dtype=matmul_dtype)
    loss = jax.block_until_ready(loss)

    ref = _reference(anchor, pos_pair, neg_pair,
                     pseudo_label_1, pseudo_label_all, fcs_1, fcs_all,
                     bdp_threshold=bdp, fdp_threshold=fdp, temp=temp, eps=eps,
                     matmul_dtype=matmul_dtype)

    assert loss.shape == (N,)
    assert jnp.allclose(loss, ref, rtol=rtol, atol=atol), (
        "max abs diff", float(jnp.max(jnp.abs(loss - ref))))


if __name__ == "__main__":
    key = jax.random.PRNGKey(0)
    k1, k2, k3 = jax.random.split(key, 3)

    # 1) Small single-block case, exact f32 matmul path, strict tolerance.
    _run_case(k1, N=8, M=16, D=32, bdp=0.3, fdp=0.4, temp=0.1, eps=1e-8,
              matmul_dtype=jnp.float32, rtol=1e-4, atol=1e-4)

    # 2) Multi-block grid (row + column blocks, padding on both axes),
    #    exact f32 path, strict tolerance (exercises online softmax + +inf padding).
    _run_case(k2, N=300, M=700, D=64, bdp=0.3, fdp=0.4, temp=0.1, eps=1e-8,
              block_n=128, block_m=256, matmul_dtype=jnp.float32,
              rtol=1e-4, atol=1e-4)

    # 3) Default performance path: bf16 MXU operands + generation-aware tiles,
    #    checked against a reference evaluated on the same bf16-rounded inputs.
    _run_case(k3, N=300, M=700, D=64, bdp=0.3, fdp=0.4, temp=0.1, eps=1e-8,
              matmul_dtype=jnp.bfloat16, rtol=2e-3, atol=2e-3)

    print("KERNEL_OK")
</pallas_src>

<mosaic_0001>
module attributes {stable_mosaic.version = 11 : i64} {
  func.func @_contrastive_kernel(%arg0: i32, %arg1: i32, %arg2: memref<2xf32, #tpu.memory_space<smem>>, %arg3: memref<8x32xf32, #tpu.memory_space<vmem>>, %arg4: memref<32x16xf32, #tpu.memory_space<vmem>>, %arg5: memref<8x1xf32, #tpu.memory_space<vmem>>, %arg6: memref<8x1xi32, #tpu.memory_space<vmem>>, %arg7: memref<1x16xi32, #tpu.memory_space<vmem>>, %arg8: memref<8x1xf32, #tpu.memory_space<vmem>>, %arg9: memref<1x16xf32, #tpu.memory_space<vmem>>, %arg10: memref<1x8xf32, #tpu.memory_space<vmem>>, %arg11: memref<8x1xf32, #tpu.memory_space<vmem>>, %arg12: memref<8x1xf32, #tpu.memory_space<vmem>>) attributes {dimension_semantics = [#tpu.dimension_semantics<parallel>, #tpu.dimension_semantics<arbitrary>], iteration_bounds = array<i64: 1, 1>, scalar_prefetch = 0 : i64, scratch_operands = 2 : i64, tpu.core_type = #tpu.core_type<tc>, window_params = [{transform_indices = @transform_0, window_bounds = array<i64: 2>}, {transform_indices = @transform_1, window_bounds = array<i64: 8, 32>}, {transform_indices = @transform_2, window_bounds = array<i64: 32, 16>}, {transform_indices = @transform_3, window_bounds = array<i64: 8, 1>}, {transform_indices = @transform_4, window_bounds = array<i64: 8, 1>}, {transform_indices = @transform_5, window_bounds = array<i64: 1, 16>}, {transform_indices = @transform_6, window_bounds = array<i64: 8, 1>}, {transform_indices = @transform_7, window_bounds = array<i64: 1, 16>}, {transform_indices = @transform_8, window_bounds = array<i64: 1, 8>}]} {
    %c0 = arith.constant 0 : index
    %0 = memref.load %arg2[%c0] : memref<2xf32, #tpu.memory_space<smem>>
    %c1 = arith.constant 1 : index
    %1 = memref.load %arg2[%c1] : memref<2xf32, #tpu.memory_space<smem>>
    %c0_i32 = arith.constant 0 : i32
    %2 = arith.cmpi eq, %arg1, %c0_i32 : i32
    %3 = arith.extui %2 : i1 to i32
    %c0_i32_0 = arith.constant 0 : i32
    %4 = arith.cmpi ne, %3, %c0_i32_0 : i32
    scf.if %4 {
      %c0_26 = arith.constant 0 : index
      %c0_27 = arith.constant 0 : index
      %42 = vector.load %arg5[%c0_26, %c0_27] : memref<8x1xf32, #tpu.memory_space<vmem>>, vector<8x1xf32>
      %c0_28 = arith.constant 0 : index
      %c0_29 = arith.constant 0 : index
      %43 = vector.load %arg11[%c0_28, %c0_29] : memref<8x1xf32, #tpu.memory_space<vmem>>, vector<8x1xf32>
      tpu.vector_store %arg11[%c0_28, %c0_29], %42 {strides = array<i32>} : memref<8x1xf32, #tpu.memory_space<vmem>>, vector<8x1xf32>,
      %cst_30 = arith.constant 1.000000e+00 : f32
      %44 = vector.broadcast %cst_30 : f32 to vector<8x1xf32>
      %c0_31 = arith.constant 0 : index
      %c0_32 = arith.constant 0 : index
      %45 = vector.load %arg12[%c0_31, %c0_32] : memref<8x1xf32, #tpu.memory_space<vmem>>, vector<8x1xf32>
      tpu.vector_store %arg12[%c0_31, %c0_32], %44 {strides = array<i32>} : memref<8x1xf32, #tpu.memory_space<vmem>>, vector<8x1xf32>,
    } else {
    }
    %c0_1 = arith.constant 0 : index
    %c0_2 = arith.constant 0 : index
    %5 = vector.load %arg3[%c0_1, %c0_2] : memref<8x32xf32, #tpu.memory_space<vmem>>, vector<8x32xf32>
    %c0_3 = arith.constant 0 : index
    %c0_4 = arith.constant 0 : index
    %6 = vector.load %arg4[%c0_3, %c0_4] : memref<32x16xf32, #tpu.memory_space<vmem>>, vector<32x16xf32>
    %cst = arith.constant dense<0.000000e+00> : vector<8x16xf32>
    %7 = tpu.matmul %5, %6, %cst {dimension_numbers = #tpu.dot_dimension_numbers<[1], [0], [0], [1], [0, 0, 1, 1], [], []>} : vector<8x32xf32>, vector<32x16xf32>, vector<8x16xf32> -> vector<8x16xf32>
    %8 = vector.broadcast %0 : f32 to vector<8x16xf32>
    %9 = arith.mulf %7, %8 : vector<8x16xf32>
    %c0_5 = arith.constant 0 : index
    %c0_6 = arith.constant 0 : index
    %10 = vector.load %arg6[%c0_5, %c0_6] : memref<8x1xi32, #tpu.memory_space<vmem>>, vector<8x1xi32>
    %c0_7 = arith.constant 0 : index
    %c0_8 = arith.constant 0 : index
    %11 = vector.load %arg7[%c0_7, %c0_8] : memref<1x16xi32, #tpu.memory_space<vmem>>, vector<1x16xi32>
    %12 = vector.broadcast %10 : vector<8x1xi32> to vector<8x16xi32>
    %13 = vector.broadcast %11 : vector<1x16xi32> to vector<8x16xi32>
    %14 = arith.cmpi ne, %12, %13 : vector<8x16xi32>
    %c0_9 = arith.constant 0 : index
    %c0_10 = arith.constant 0 : index
    %15 = vector.load %arg9[%c0_9, %c0_10] : memref<1x16xf32, #tpu.memory_space<vmem>>, vector<1x16xf32>
    %c0_11 = arith.constant 0 : index
    %c0_12 = arith.constant 0 : index
    %16 = vector.load %arg8[%c0_11, %c0_12] : memref<8x1xf32, #tpu.memory_space<vmem>>, vector<8x1xf32>
    %17 = vector.broadcast %15 : vector<1x16xf32> to vector<8x16xf32>
    %18 = vector.broadcast %16 : vector<8x1xf32> to vector<8x16xf32>
    %19 = arith.cmpf ole, %17, %18 : vector<8x16xf32>
    %20 = arith.andi %14, %19 : vector<8x16xi1>
    %c0_13 = arith.constant 0 : index
    %c0_14 = arith.constant 0 : index
    %21 = vector.load %arg11[%c0_13, %c0_14] : memref<8x1xf32, #tpu.memory_space<vmem>>, vector<8x1xf32>
    %cst_15 = arith.constant dense<0xFF800000> : vector<8xf32>
    %22 = vector.multi_reduction <maximumf>, %9, %cst_15 [1] : vector<8x16xf32> to vector<8xf32>
    %23 = vector.shape_cast %22 : vector<8xf32> to vector<8x1xf32>
    %24 = arith.maximumf %21, %23 : vector<8x1xf32>
    %25 = arith.subf %21, %24 : vector<8x1xf32>
    %26 = math.exp %25 : vector<8x1xf32>
    %27 = vector.broadcast %24 : vector<8x1xf32> to vector<8x16xf32>
    %28 = arith.subf %9, %27 : vector<8x16xf32>
    %29 = math.exp %28 : vector<8x16xf32>
    %cst_16 = arith.constant 0.000000e+00 : f32
    %30 = vector.broadcast %cst_16 : f32 to vector<8x16xf32>
    %31 = arith.select %20, %29, %30 : vector<8x16xi1>, vector<8x16xf32>
    %c0_17 = arith.constant 0 : index
    %c0_18 = arith.constant 0 : index
    %32 = vector.load %arg12[%c0_17, %c0_18] : memref<8x1xf32, #tpu.memory_space<vmem>>, vector<8x1xf32>
    %33 = arith.mulf %26, %32 : vector<8x1xf32>
    %cst_19 = arith.constant dense<0.000000e+00> : vector<8xf32>
    %34 = vector.multi_reduction <add>, %31, %cst_19 [1] : vector<8x16xf32> to vector<8xf32>
    %35 = vector.shape_cast %34 : vector<8xf32> to vector<8x1xf32>
    %36 = arith.addf %33, %35 : vector<8x1xf32>
    %c0_20 = arith.constant 0 : index
    %c0_21 = arith.constant 0 : index
    %37 = vector.load %arg12[%c0_20, %c0_21] : memref<8x1xf32, #tpu.memory_space<vmem>>, vector<8x1xf32>
    tpu.vector_store %arg12[%c0_20, %c0_21], %36 {strides = array<i32>} : memref<8x1xf32, #tpu.memory_space<vmem>>, vector<8x1xf32>,
    %c0_22 = arith.constant 0 : index
    %c0_23 = arith.constant 0 : index
    %38 = vector.load %arg11[%c0_22, %c0_23] : memref<8x1xf32, #tpu.memory_space<vmem>>, vector<8x1xf32>
    tpu.vector_store %arg11[%c0_22, %c0_23], %24 {strides = array<i32>} : memref<8x1xf32, #tpu.memory_space<vmem>>, vector<8x1xf32>,
    %c0_i32_24 = arith.constant 0 : i32
    %39 = arith.cmpi eq, %arg1, %c0_i32_24 : i32
    %40 = arith.extui %39 : i1 to i32
    %c0_i32_25 = arith.constant 0 : i32
    %41 = arith.cmpi ne, %40, %c0_i32_25 : i32
    scf.if %41 {
      %c0_26 = arith.constant 0 : index
      %c0_27 = arith.constant 0 : index
      %42 = vector.load %arg5[%c0_26, %c0_27] : memref<8x1xf32, #tpu.memory_space<vmem>>, vector<8x1xf32>
      %c0_28 = arith.constant 0 : index
      %c0_29 = arith.constant 0 : index
      %43 = vector.load %arg11[%c0_28, %c0_29] : memref<8x1xf32, #tpu.memory_space<vmem>>, vector<8x1xf32>
      %44 = arith.subf %42, %43 : vector<8x1xf32>
      %45 = math.exp %44 : vector<8x1xf32>
      %c0_30 = arith.constant 0 : index
      %c0_31 = arith.constant 0 : index
      %46 = vector.load %arg12[%c0_30, %c0_31] : memref<8x1xf32, #tpu.memory_space<vmem>>, vector<8x1xf32>
      %47 = vector.broadcast %1 : f32 to vector<8x1xf32>
      %48 = arith.addf %46, %47 : vector<8x1xf32>
      %49 = tpu.reciprocal %48 : vector<8x1xf32> -> vector<8x1xf32>
      %50 = arith.mulf %45, %49 : vector<8x1xf32>
      %51 = vector.broadcast %1 : f32 to vector<8x1xf32>
      %52 = arith.addf %50, %51 : vector<8x1xf32>
      %53 = math.log %52 : vector<8x1xf32>
      %cst_32 = arith.constant 0.000000e+00 : f32
      %54 = vector.broadcast %cst_32 : f32 to vector<8x1xf32>
      %55 = arith.subf %54, %53 : vector<8x1xf32>
      %56 = tpu.transpose %55, [1, 0] : vector<8x1xf32> -> vector<1x8xf32>
      %c0_33 = arith.constant 0 : index
      %c0_34 = arith.constant 0 : index
      %57 = vector.load %arg10[%c0_33, %c0_34] : memref<1x8xf32, #tpu.memory_space<vmem>>, vector<1x8xf32>
      tpu.vector_store %arg10[%c0_33, %c0_34], %56 {strides = array<i32>} : memref<1x8xf32, #tpu.memory_space<vmem>>, vector<1x8xf32>,
    } else {
    }
    return
  }
  func.func @transform_0(%arg0: i32, %arg1: i32) -> i32 {
    %c0_i32 = arith.constant 0 : i32
    %c0_i32_0 = arith.constant 0 : i32
    return %c0_i32 : i32
  }
  func.func @transform_1(%arg0: i32, %arg1: i32) -> (i32, i32) {
    %c0_i32 = arith.constant 0 : i32
    %c0_i32_0 = arith.constant 0 : i32
    return %arg0, %c0_i32 : i32, i32
  }
  func.func @transform_2(%arg0: i32, %arg1: i32) -> (i32, i32) {
    %c0_i32 = arith.constant 0 : i32
    %c0_i32_0 = arith.constant 0 : i32
    return %c0_i32, %arg1 : i32, i32
  }
  func.func @transform_3(%arg0: i32, %arg1: i32) -> (i32, i32) {
    %c0_i32 = arith.constant 0 : i32
    %c0_i32_0 = arith.constant 0 : i32
    return %arg0, %c0_i32 : i32, i32
  }
  func.func @transform_4(%arg0: i32, %arg1: i32) -> (i32, i32) {
    %c0_i32 = arith.constant 0 : i32
    %c0_i32_0 = arith.constant 0 : i32
    return %arg0, %c0_i32 : i32, i32
  }
  func.func @transform_5(%arg0: i32, %arg1: i32) -> (i32, i32) {
    %c0_i32 = arith.constant 0 : i32
    %c0_i32_0 = arith.constant 0 : i32
    return %c0_i32, %arg1 : i32, i32
  }
  func.func @transform_6(%arg0: i32, %arg1: i32) -> (i32, i32) {
    %c0_i32 = arith.constant 0 : i32
    %c0_i32_0 = arith.constant 0 : i32
    return %arg0, %c0_i32 : i32, i32
  }
  func.func @transform_7(%arg0: i32, %arg1: i32) -> (i32, i32) {
    %c0_i32 = arith.constant 0 : i32
    %c0_i32_0 = arith.constant 0 : i32
    return %c0_i32, %arg1 : i32, i32
  }
  func.func @transform_8(%arg0: i32, %arg1: i32) -> (i32, i32) {
    %c0_i32 = arith.constant 0 : i32
    %c0_i32_0 = arith.constant 0 : i32
    return %c0_i32, %arg0 : i32, i32
  }
}

</mosaic_0001>

<llo_original>
// kernel: tpu_custom_call.1
$region0: #{tpu_custom_call.1}
  #allocation0 [shape = 'u32[]', space=smem, size = 0x4, offset = 0x4, fixed_abs, tag = 'smem constant byte address 0x4 - core index']
  #allocation1 [shape = 'u32[144,128]{1,0:T(1,128)}', space=vmem, size = 0x12000, scoped, tag = 'internal scratch']
  #allocation2 [shape = 'f32[8,1]{1,0:T(8,128)}', space=vmem, size = 0x1000, scoped, tag = 'scratch operand']
  #allocation3 [shape = 'f32[8,1]{1,0:T(8,128)}', space=vmem, size = 0x1000, scoped, tag = 'scratch operand']
  %s0 = inlined_call_operand.vmem [shape: f32[2], index: 0, kind: input, shape index: {}]
  %s1 = inlined_call_operand.vmem [shape: f32[8,32], index: 1, kind: input, shape index: {}]
  %s2 = inlined_call_operand.vmem [shape: f32[32,16], index: 2, kind: input, shape index: {}]
  %s3 = inlined_call_operand.vmem [shape: f32[8,1], index: 3, kind: input, shape index: {}]
  %s4 = inlined_call_operand.vmem [shape: s32[8,1], index: 4, kind: input, shape index: {}]
  %s5 = inlined_call_operand.vmem [shape: s32[1,16], index: 5, kind: input, shape index: {}]
  %s6 = inlined_call_operand.vmem [shape: f32[8,1], index: 6, kind: input, shape index: {}]
  %s7 = inlined_call_operand.vmem [shape: f32[1,16], index: 7, kind: input, shape index: {}]
  %s8 = inlined_call_operand.hbm [shape: f32[1,8], index: 8, kind: output, shape index: {}]
  %s9 = sld [smem:[#allocation0]]
  $region54: #{tpu_custom_call.1} parent=0
    _
  %s11 = ssub.s32 1, %s9
  %s12 = scalar_select 0, %s11, %s9
  $region1: #{tpu_custom_call.1} parent=0
    #allocation4 [shape = 'u8[512]{0}', space=smem, size = 0x200, scoped, tag = 'input window, operand 0, single buffered']
    #allocation5 [shape = 's32[1]{0}', space=sflag, size = 0x4, scoped, tag = 'scoped memory for tpu_custom_call.1']
    #allocation6 [shape = 's32[1]{0}', space=sflag, size = 0x4, scoped, tag = 'scoped memory for tpu_custom_call.1']
    #allocation7 [shape = 'u8[512]{0}', space=vmem, size = 0x400, scoped, tag = 'output window, operand 0, single buffered']
    %13 = vsyncpa [#allocation6], 0
    %14 = vsyncpa [#allocation5], 0
    // Predicated region
    $region2: #{tpu_custom_call.1} parent=1 // pred_check
      _
    $region3: #{tpu_custom_call.1} parent=1 // pred_check_branch
      %16 = sbr.rel (0) target = $region5
    $region4: #{tpu_custom_call.1} parent=1 // pred_region
      %s18 = ssub.s32 16, 16
      %19 = vsyncadd [#allocation6], %s18
      %s21 = sshll.u32 %s0, 4
      %s22 = int_to_ptr.vmem [resolvable:$true] %s21
      %24 = dma.vmem_to_smem %s22, 16, [#allocation4], [#allocation6]
    $region5: #{tpu_custom_call.1} parent=1 // pred_fallthru
      _
    // Predicated region
    $region6: #{tpu_custom_call.1} parent=1 // pred_check
      _
    $region7: #{tpu_custom_call.1} parent=1 // pred_check_branch
      %26 = sbr.rel (0) target = $region9
    $region8: #{tpu_custom_call.1} parent=1 // pred_region
      _
    $region9: #{tpu_custom_call.1} parent=1 // pred_fallthru
      _
    // Predicated region
    $region10: #{tpu_custom_call.1} parent=1 // pred_check
      _
    $region11: #{tpu_custom_call.1} parent=1 // pred_check_branch
      %28 = sbr.rel (0) target = $region13
    $region12: #{tpu_custom_call.1} parent=1 // pred_region
      _
    $region13: #{tpu_custom_call.1} parent=1 // pred_fallthru
      _
    // Predicated region
    $region14: #{tpu_custom_call.1} parent=1 // pred_check
      _
    $region15: #{tpu_custom_call.1} parent=1 // pred_check_branch
      %30 = sbr.rel (0) target = $region17
    $region16: #{tpu_custom_call.1} parent=1 // pred_region
      _
    $region17: #{tpu_custom_call.1} parent=1 // pred_fallthru
      _
    // Predicated region
    $region18: #{tpu_custom_call.1} parent=1 // pred_check
      _
    $region19: #{tpu_custom_call.1} parent=1 // pred_check_branch
      %32 = sbr.rel (0) target = $region21
    $region20: #{tpu_custom_call.1} parent=1 // pred_region
      _
    $region21: #{tpu_custom_call.1} parent=1 // pred_fallthru
      _
    // Predicated region
    $region22: #{tpu_custom_call.1} parent=1 // pred_check
      _
    $region23: #{tpu_custom_call.1} parent=1 // pred_check_branch
      %34 = sbr.rel (0) target = $region25
    $region24: #{tpu_custom_call.1} parent=1 // pred_region
      _
    $region25: #{tpu_custom_call.1} parent=1 // pred_fallthru
      _
    // Predicated region
    $region26: #{tpu_custom_call.1} parent=1 // pred_check
      _
    $region27: #{tpu_custom_call.1} parent=1 // pred_check_branch
      %36 = sbr.rel (0) target = $region29
    $region28: #{tpu_custom_call.1} parent=1 // pred_region
      _
    $region29: #{tpu_custom_call.1} parent=1 // pred_fallthru
      _
    // Predicated region
    $region30: #{tpu_custom_call.1} parent=1 // pred_check
      _
    $region31: #{tpu_custom_call.1} parent=1 // pred_check_branch
      %38 = sbr.rel (0) target = $region33
    $region32: #{tpu_custom_call.1} parent=1 // pred_region
      _
    $region33: #{tpu_custom_call.1} parent=1 // pred_fallthru
      _
    // Predicated region
    $region34: #{tpu_custom_call.1} parent=1 // pred_check
      _
    $region35: #{tpu_custom_call.1} parent=1 // pred_check_branch
      %40 = sbr.rel (0) target = $region37
    $region36: #{tpu_custom_call.1} parent=1 // pred_region
      %41 = dma.done [#allocation6], 16
    $region37: #{tpu_custom_call.1} parent=1 // pred_fallthru
      _
    %42 = sfence
    %s43 = sld [smem:[#allocation4]]
    %s44 = sld [smem:[#allocation4 + $0x1]]
    %p45 = scmp.eq.s32.totalorder 0, 0
    // Predicated region
    $region38: #{tpu_custom_call.1} parent=1 // pred_check
      %p46 = pneg %p45
    $region39: #{tpu_custom_call.1} parent=1 // pred_check_branch
      %48 = sbr.rel (%p46) target = $region41
    $region40: #{tpu_custom_call.1} parent=1 // pred_region
      %v49 = vld [vmem:[%s3] sm:$0xff]
      %vm50 = vcmask 7168
      %51 = vst.msk [vmem:[#allocation2] sm:$0xff] %vm50, %v49
      %52 = vst.msk [vmem:[#allocation3] sm:$0xff] %vm50, 1.0
    $region41: #{tpu_custom_call.1} parent=1 // pred_fallthru
      _
    %v53 = vld [vmem:[%s1] sm:$0xff]
    %v54 = vld [vmem:[%s2] sm:$0xff]
    %v55 = vld [vmem:[%s2 + $0x8] sm:$0xff]
    %v56 = vld [vmem:[%s2 + $0x10] sm:$0xff]
    %v57 = vld [vmem:[%s2 + $0x18] sm:$0xff]
    %vm58 = vcmask 261120
    %v60 = vsel %vm58, %v53, 0
    %62 = vmatprep.subr.mxu0 0.0
    %63 = vmatpush1.msra.mxu0 %v54
    %64 = vmatprep.subr.mxu0 0.0
    %65 = vmatpush1.msra.mxu0 %v55
    %66 = vmatprep.subr.mxu0 0.0
    %67 = vmatpush1.msra.mxu0 %v56
    %68 = vmatprep.subr.mxu0 0.0
    %69 = vmatpush1.msra.mxu0 %v57
    %70 = vmatprep.subr.mxu0 0.0
    %71 = vmatpush1.msra.mxu0 0.0
    %72 = vmatprep.subr.mxu0 0.0
    %73 = vmatpush1.msra.mxu0 0.0
    %74 = vmatprep.subr.mxu0 0.0
    %75 = vmatpush1.msra.mxu0 0.0
    %76 = vmatprep.subr.mxu0 0.0
    %77 = vmatpush1.msra.mxu0 0.0
    %78 = vmatprep.subr.mxu0 0.0
    %79 = vmatpush1.msra.mxu0 0.0
    %80 = vmatprep.subr.mxu0 0.0
    %81 = vmatpush1.msra.mxu0 0.0
    %82 = vmatprep.subr.mxu0 0.0
    %83 = vmatpush1.msra.mxu0 0.0
    %84 = vmatprep.subr.mxu0 0.0
    %85 = vmatpush1.msra.mxu0 0.0
    %86 = vmatprep.subr.mxu0 0.0
    %87 = vmatpush1.msra.mxu0 0.0
    %88 = vmatprep.subr.mxu0 0.0
    %89 = vmatpush1.msra.mxu0 0.0
    %90 = vmatprep.subr.mxu0 0.0
    %91 = vmatpush1.msra.mxu0 0.0
    %92 = vmatprep.subr.mxu0 0.0
    %93 = vmatpush1.msra.mxu0 0.0
    %94 = vmatprep.subr.mxu0 0.0
    %95 = vmatpush1.msra.mxu0 0.0
    %96 = vmatprep.subr.mxu0 0.0
    %97 = vmatpush1.msra.mxu0 0.0
    %98 = vmatprep.subr.mxu0 0.0
    %99 = vmatpush1.msra.mxu0 0.0
    %100 = vmatprep.subr.mxu0 0.0
    %101 = vmatpush1.msra.mxu0 0.0
    %102 = vmatprep.subr.mxu0 0.0
    %103 = vmatpush1.msra.mxu0 0.0
    %104 = vmatprep.subr.mxu0 0.0
    %105 = vmatpush1.msra.mxu0 0.0
    %106 = vmatprep.subr.mxu0 0.0
    %107 = vmatpush1.msra.mxu0 0.0
    %108 = vmatprep.subr.mxu0 0.0
    %109 = vmatpush1.msra.mxu0 0.0
    %110 = vmatprep.subr.mxu0 0.0
    %111 = vmatpush1.msra.mxu0 0.0
    %112 = vmatprep.subr.mxu0 0.0
    %113 = vmatpush1.msra.mxu0 0.0
    %114 = vmatprep.subr.mxu0 0.0
    %115 = vmatpush1.msra.mxu0 0.0
    %116 = vmatprep.subr.mxu0 0.0
    %117 = vmatpush1.msra.mxu0 0.0
    %118 = vmatprep.subr.mxu0 0.0
    %119 = vmatpush1.msra.mxu0 0.0
    %120 = vmatprep.subr.mxu0 0.0
    %121 = vmatpush1.msra.mxu0 0.0
    %122 = vmatprep.subr.mxu0 0.0
    %123 = vmatpush1.msra.mxu0 0.0
    %124 = vmatprep.subr.mxu0 0.0
    %125 = vmatpush1.msra.mxu0 0.0
    %126 = vmatprep.mubr.f32.mxu0 0.0
    %127 = vmatmul.mubr.f32.gmra.mrb[0].mxu0 %v60
    %v128 = vpop.f32.mrb[0].mxu0
    %v129 = vadd.f32 0.0, %v128
    %v130 = vpop.f32.mrb[0].mxu0
    %131 = vdwg.mxu0
    %v132 = vstv %s43
    %v133 = vmul.f32 %v129, %v132
    %v134 = vld [vmem:[%s4] sm:$0xff]
    %v135 = vld [vmem:[%s5] sm:$0x1]
    %136 = vset.pattern.permute.xlu0 0
    %137 = vperm.xlu0 %136, %v134
    %v138 = vpop.permute.xlu0 %137
    %v139 = vlaneseq
    %v140 = vshrl.u32 %v139, 7
    %v141 = vsub.s32 0, %v140
    %v142 = vrot.slane %v135, %v141
    %vm143 = vcmp.ne.s32.totalorder %v138, %v142
    %v144 = vld [vmem:[%s7] sm:$0x1]
    %v145 = vld [vmem:[%s6] sm:$0xff]
    %v147 = vlaneseq
    %v148 = vshrl.u32 %v147, 7
    %v149 = vsub.s32 0, %v148
    %v150 = vrot.slane %v144, %v149
    %153 = vset.pattern.permute.xlu0 0
    %154 = vperm.xlu0 %153, %v145
    %v155 = vpop.permute.xlu0 %154
    %vm157 = vcmp.le.f32.partialorder %v150, %v155
    %vm158 = vmand %vm143, %vm157
    %v159 = vld [vmem:[#allocation2] sm:$0xff]
    %vm160 = vcmask 130048
    %v161 = vsel %vm160, %v133, -inf
    %162 = vmax.xlane.f32.xlu0 %v161
    %v163 = vpop.xlane.xlu0 %162
    %v164 = vmax.f32 %v159, %v163
    %v165 = vsub.f32 %v159, %v164
    %v166 = vmul.f32 %v165, 1.442695
    %v167 = vpow.pop %v166
    %169 = vset.pattern.permute.xlu0 0
    %170 = vperm.xlu0 %169, %v164
    %v171 = vpop.permute.xlu0 %170
    %v173 = vsub.f32 %v133, %v171
    %v174 = vmul.f32 %v173, 1.442695
    %v175 = vpow.pop %v174
    %v176 = vsel %vm158, %v175, 0.0
    %v177 = vld [vmem:[#allocation3] sm:$0xff]
    %v178 = vmul.f32 %v167, %v177
    %v179 = vsel %vm160, %v176, 0.0
    %180 = vadd.xlane.f32.xlu0 %v179
    %v181 = vpop.xlane.xlu0 %180
    %v182 = vadd.f32 %v178, %v181
    %vm183 = vcmask 7168
    %184 = vst.msk [vmem:[#allocation3] sm:$0xff] %vm183, %v182
    %185 = vst.msk [vmem:[#allocation2] sm:$0xff] %vm183, %v164
    // Predicated region
    $region42: #{tpu_custom_call.1} parent=1 // pred_check
      %p186 = pneg %p45
    $region43: #{tpu_custom_call.1} parent=1 // pred_check_branch
      %188 = sbr.rel (%p186) target = $region45
    $region44: #{tpu_custom_call.1} parent=1 // pred_region
      %v189 = vld [vmem:[%s3] sm:$0xff]
      %v190 = vld [vmem:[#allocation2] sm:$0xff]
      %v191 = vsub.f32 %v189, %v190
      %v192 = vmul.f32 %v191, 1.442695
      %v193 = vpow.pop %v192
      %v194 = vld [vmem:[#allocation3] sm:$0xff]
      %v195 = vstv %s44
      %v196 = vadd.f32 %v194, %v195
      %v197 = vrcp.pop %v196
      %v198 = vmul.f32 %v193, %v197
      %v199 = vadd.f32 %v198, %v195
      %v200 = vlog2.pop %v199
      %v201 = vmul.f32 %v200, 0.6931472
      %v202 = vsub.f32 0.0, %v201
      %203 = vxpose.xlu0.b32.start [1/16] %v202, 128
      %204 = vxpose.xlu0.b32.cont [2/16] 0.0, 128
      %205 = vxpose.xlu0.b32.cont [3/16] 0.0, 128
      %206 = vxpose.xlu0.b32.cont [4/16] 0.0, 128
      %207 = vxpose.xlu0.b32.cont [5/16] 0.0, 128
      %208 = vxpose.xlu0.b32.cont [6/16] 0.0, 128
      %209 = vxpose.xlu0.b32.cont [7/16] 0.0, 128
      %210 = vxpose.xlu0.b32.cont [8/16] 0.0, 128
      %211 = vxpose.xlu0.b32.cont [9/16] 0.0, 128
      %212 = vxpose.xlu0.b32.cont [10/16] 0.0, 128
      %213 = vxpose.xlu0.b32.cont [11/16] 0.0, 128
      %214 = vxpose.xlu0.b32.cont [12/16] 0.0, 128
      %215 = vxpose.xlu0.b32.cont [13/16] 0.0, 128
      %216 = vxpose.xlu0.b32.cont [14/16] 0.0, 128
      %217 = vxpose.xlu0.b32.cont [15/16] 0.0, 128
      %218 = vxpose.xlu0.b32.end [16/16] 0.0, 128
      %v219 = vpop.trf.xlu0
      %v220 = vpop.trf.xlu0
      %v221 = vpop.trf.xlu0
      %v222 = vpop.trf.xlu0
      %v223 = vpop.trf.xlu0
      %v224 = vpop.trf.xlu0
      %v225 = vpop.trf.xlu0
      %v226 = vpop.trf.xlu0
      %v227 = vpop.trf.xlu0
      %v228 = vpop.trf.xlu0
      %v229 = vpop.trf.xlu0
      %v230 = vpop.trf.xlu0
      %v231 = vpop.trf.xlu0
      %v232 = vpop.trf.xlu0
      %v233 = vpop.trf.xlu0
      %v234 = vpop.trf.xlu0
      %vm235 = vcmask 57344
      %236 = vst.msk [vmem:[#allocation7] sm:$0x1] %vm235, %v219
    $region45: #{tpu_custom_call.1} parent=1 // pred_fallthru
      _
    // Predicated region
    $region46: #{tpu_custom_call.1} parent=1 // pred_check
      _
    $region47: #{tpu_custom_call.1} parent=1 // pred_check_branch
      %238 = sbr.rel (0) target = $region49
    $region48: #{tpu_custom_call.1} parent=1 // pred_region
      %s240 = ssub.s32 16, 16
      %241 = vsyncadd [#allocation5], %s240
      %s243 = sshll.u32 [#allocation7], 4
      %s244 = int_to_ptr.vmem [resolvable:$true] %s243
      %246 = dma.vmem_to_hbm [thread:$0]  %s244, 16, %s8, [#allocation5]
    $region49: #{tpu_custom_call.1} parent=1 // pred_fallthru
      _
    // Predicated region
    $region50: #{tpu_custom_call.1} parent=1 // pred_check
      _
    $region51: #{tpu_custom_call.1} parent=1 // pred_check_branch
      %248 = sbr.rel (0) target = $region53
    $region52: #{tpu_custom_call.1} parent=1 // pred_region
      %249 = dma.done [#allocation5], 16
    $region53: #{tpu_custom_call.1} parent=1 // pred_fallthru
      _
    %250 = vsyncpa [#allocation5], 1
    %251 = vsyncpa [#allocation6], 1

</llo_original>
